<compile_context>
chip_gen: v6e
topology: v6e:2x2x1
jax: 0.10.0
libtpu: 0.0.40
codegen_flags: <defaults>
</compile_context>

<pallas_src>
import functools

import jax
import jax.numpy as jnp
from jax.experimental import pallas as pl
from jax.experimental.pallas import tpu as pltpu

NEG_BIG = -1e30                        # stand-in for torch's float('-inf') scatter
_BLOCK_BUDGET_BYTES = 2 * 1024 * 1024  # per-block VMEM target (double-buffered)


def _largest_divisor_leq(n, cap):
    cap = max(1, min(n, cap))
    best = 1
    for d in range(1, cap + 1):
        if n % d == 0:
            best = d
    return best


def _megacore_cap(n):
    # Keep >= 2 grid steps along the parallel batch axis whenever n allows it,
    # so odd batch sizes still engage both v7x TensorCores.
    return max(1, n // 2) if n >= 2 else 1


# ---------------------------------------------------------------------------
# Stage 1: streaming bucket sums (inputs stay in HBM in the caller's dtype).
# ---------------------------------------------------------------------------
def _bucket_sum_kernel(t_ref, out_ref):
    out_ref[...] = jnp.sum(t_ref[...].astype(jnp.float32), axis=2)


def _pick_bucket_block(nb, bytes_per_bucket_row):
    max_rows = max(1, _BLOCK_BUDGET_BYTES // bytes_per_bucket_row)
    if nb <= max_rows:
        return nb
    best = None
    # Keep the (bh, nb, d) f32 output block's second-minor dim 8-aligned.
    for cand in range(8, nb + 1, 8):
        if nb % cand == 0 and cand <= max_rows:
            best = cand
    return best if best is not None else nb


def _bucket_sums(t_b):
    """t_b: (bh, nb, bucket, d) caller dtype -> (bh, nb, d) f32 bucket sums."""
    bh, nb, bsz, d = t_b.shape
    itemsize = t_b.dtype.itemsize
    nb_blk = _pick_bucket_block(nb, bsz * d * itemsize)
    bytes_per_sample = nb_blk * bsz * d * itemsize
    bh_blk = _largest_divisor_leq(
        bh, min(_megacore_cap(bh),
                max(1, _BLOCK_BUDGET_BYTES // max(1, bytes_per_sample))))
    grid = (bh // bh_blk, nb // nb_blk)
    return pl.pallas_call(
        _bucket_sum_kernel,
        out_shape=jax.ShapeDtypeStruct((bh, nb, d), jnp.float32),
        grid=grid,
        in_specs=[pl.BlockSpec((bh_blk, nb_blk, bsz, d),
                               lambda i, j: (i, j, 0, 0))],
        out_specs=pl.BlockSpec((bh_blk, nb_blk, d), lambda i, j: (i, j, 0)),
        compiler_params=pltpu.CompilerParams(
            dimension_semantics=("parallel", "parallel")),
    )(t_b)


# ---------------------------------------------------------------------------
# Stage 2: routing kernels (tiny; one batched f32 dot of the bucket sums).
# ---------------------------------------------------------------------------
def _scores(sq, sk, scale):
    r = jnp.einsum('bie,bje->bij', sq, sk,
                   preferred_element_type=jnp.float32)
    return r * scale


def _topk_route_kernel(sq_ref, sk_ref, out_ref, *, scale, k_top):
    # `scale` already folds dim**-0.5, both bucket-mean reciprocals and the
    # 1/temperature of differentiable_topk, so `logits` needs no re-scaling.
    logits = _scores(sq_ref[...], sk_ref[...], scale)          # (bb, nq, nk)
    bb, nq, nk = logits.shape
    col = jax.lax.broadcasted_iota(jnp.int32, logits.shape, 2)
    wide_col = jax.lax.broadcasted_iota(jnp.int32, (bb, nq, k_top * nk), 2)
    acc = jnp.zeros((bb, nq, k_top * nk), jnp.float32)
    for i in range(k_top):
        m = jnp.max(logits, axis=-1, keepdims=True)
        s = jnp.sum(jnp.exp(logits - m), axis=-1, keepdims=True)
        val = pl.reciprocal(s, approx=True)        # max softmax prob = 1/s (EUP)
        # first column attaining the max (matches torch.topk / jnp.argmax)
        first = jnp.min(jnp.where(logits >= m, col, nk), axis=-1, keepdims=True)
        acc = acc + jnp.where(wide_col == first + i * nk, val, 0.0)
        if i + 1 < k_top:
            logits = jnp.where(col == first, NEG_BIG, logits)
    out_ref[...] = acc.astype(out_ref.dtype)


def _sinkhorn_route_kernel(sq_ref, sk_ref, gumbel_ref, out_ref, *,
                           scale, inv_temp, n_iters, eps):
    r = _scores(sq_ref[...], sk_ref[...], scale)
    r = jnp.log(jnp.maximum(r, 0.0) + eps)                     # log(relu(R)+eps)
    r = (r + gumbel_ref[...]) * inv_temp
    for _ in range(n_iters):
        m2 = jnp.max(r, axis=2, keepdims=True)
        r = r - (m2 + jnp.log(jnp.sum(jnp.exp(r - m2), axis=2, keepdims=True)))
        m1 = jnp.max(r, axis=1, keepdims=True)
        r = r - (m1 + jnp.log(jnp.sum(jnp.exp(r - m1), axis=1, keepdims=True)))
    out_ref[...] = jnp.exp(r).astype(out_ref.dtype)


def attention_sort_net_forward(q, k, *, heads, bucket_size, kv_bucket_size, dim,
                               non_permutative, temperature, sinkhorn_iter,
                               n_sortcut=0, topk=1, gumbel_noise=None):
    """Pallas TPU forward of AttentionSortNet.

    q: (bh, seq_q, d)  k: (bh, seq_k, d).  `heads` only enters the torch
    forward as an unused `b = bh // heads`, so it does not affect the math.
    Inputs stay in their caller dtype in HBM; all accumulation is f32.
    """
    out_dtype = q.dtype
    bh, t_q, d = q.shape
    t_k = k.shape[1]

    if n_sortcut == 0:
        nq, q_bsz = t_q // bucket_size, bucket_size
    else:
        nq, q_bsz = 1, t_q
    nk, kv_bsz = t_k // kv_bucket_size, kv_bucket_size

    # Stage 1: streamed, tiled bucket sums (no wrapper-side f32 upcast of q/k).
    sq = _bucket_sums(q.reshape(bh, nq, q_bsz, d))      # (bh, nq, d) f32
    sk = _bucket_sums(k.reshape(bh, nk, kv_bsz, d))     # (bh, nk, d) f32

    # dim**-0.5 with both bucket-mean reciprocals folded in (applied once to R).
    scale = float(dim) ** -0.5 / float(q_bsz * kv_bsz)

    # Stage 2: tiny routing kernel, tiled over the batch only.
    bytes_per_sample = 4 * (nq * d + nk * d + 2 * nq * nk
                            + nq * max(1, int(topk)) * nk)
    bh_blk = _largest_divisor_leq(
        bh, min(_megacore_cap(bh),
                max(1, _BLOCK_BUDGET_BYTES // max(1, bytes_per_sample))))
    grid = (bh // bh_blk,)
    cparams = pltpu.CompilerParams(dimension_semantics=("parallel",))
    sq_spec = pl.BlockSpec((bh_blk, nq, d), lambda i: (i, 0, 0))
    sk_spec = pl.BlockSpec((bh_blk, nk, d), lambda i: (i, 0, 0))

    if non_permutative:
        k_top = topk if n_sortcut == 0 else n_sortcut
        kern = functools.partial(_topk_route_kernel,
                                 scale=scale * (1.0 / 0.75),  # torch default temp
                                 k_top=k_top)
        out = pl.pallas_call(
            kern,
            out_shape=jax.ShapeDtypeStruct((bh, nq, k_top * nk), out_dtype),
            grid=grid,
            in_specs=[sq_spec, sk_spec],
            out_specs=pl.BlockSpec((bh_blk, nq, k_top * nk),
                                   lambda i: (i, 0, 0)),
            compiler_params=cparams,
        )(sq, sk)
        # (bh, nq, k_top*nk) -> (bh, k_top*nq, nk) is a free contiguous view and
        # is identical to torch.cat(dim=-1).reshape(bh, k*n, nk).
        return out.reshape(bh, k_top * nq, nk)

    assert gumbel_noise is not None and gumbel_noise.shape == (bh, nq, nk)
    kern = functools.partial(_sinkhorn_route_kernel, scale=scale,
                             inv_temp=1.0 / float(temperature),
                             n_iters=int(sinkhorn_iter), eps=1e-6)
    out = pl.pallas_call(
        kern,
        out_shape=jax.ShapeDtypeStruct((bh, nq, nk), out_dtype),
        grid=grid,
        in_specs=[sq_spec, sk_spec,
                  pl.BlockSpec((bh_blk, nq, nk), lambda i: (i, 0, 0))],
        out_specs=pl.BlockSpec((bh_blk, nq, nk), lambda i: (i, 0, 0)),
        compiler_params=cparams,
    )(sq, sk, gumbel_noise.astype(jnp.float32))
    return out


# ----------------------------------------------------------------------------
# Pure-JAX reference mirroring the PyTorch forward (for the correctness check).
# ----------------------------------------------------------------------------
def _reference_forward(q, k, *, bucket_size, kv_bucket_size, dim,
                       non_permutative, temperature, sinkhorn_iter,
                       n_sortcut=0, topk=1, gumbel_noise=None):
    bh, t_q, d = q.shape
    nk = k.shape[1] // kv_bucket_size
    if n_sortcut == 0:
        b_q = q.reshape(bh, t_q // bucket_size, bucket_size, d)
    else:
        b_q = q.reshape(bh, 1, t_q, d)
    b_k = k.reshape(bh, nk, kv_bucket_size, d)
    sq = b_q.mean(axis=2)
    sk = b_k.mean(axis=2)
    R = jnp.einsum('bie,bje->bij', sq, sk,
                   precision=jax.lax.Precision.HIGHEST) * float(dim) ** -0.5
    if non_permutative:
        kk = topk if n_sortcut == 0 else n_sortcut
        x = R
        outs = []
        for i in range(kk):
            sm = jax.nn.softmax(x / 0.75, axis=-1)
            val = jnp.max(sm, axis=-1, keepdims=True)
            onehot = jax.nn.one_hot(jnp.argmax(sm, axis=-1), nk, dtype=sm.dtype)
            outs.append(onehot * val)
            if i != kk - 1:
                x = jnp.where(onehot > 0, NEG_BIG, x)
        out = jnp.concatenate(outs, axis=-1)
        return out.reshape(bh, kk * R.shape[1], nk)
    r = jnp.log(jnp.maximum(R, 0.0) + 1e-6)
    r = (r + gumbel_noise) / temperature
    for _ in range(sinkhorn_iter):
        r = r - jax.scipy.special.logsumexp(r, axis=2, keepdims=True)
        r = r - jax.scipy.special.logsumexp(r, axis=1, keepdims=True)
    return jnp.exp(r)


if __name__ == "__main__":
    heads = 4
    batch = 2
    bh = batch * heads           # 8
    dim = 32
    seq_q = 64
    seq_k = 64
    bucket_size = 8
    kv_bucket_size = 8
    temperature = 0.7
    sinkhorn_iter = 8

    key = jax.random.PRNGKey(0)
    kq, kk_, kg = jax.random.split(key, 3)
    q = jax.random.normal(kq, (bh, seq_q, dim), jnp.float32)
    k = jax.random.normal(kk_, (bh, seq_k, dim), jnp.float32)

    common = dict(heads=heads, bucket_size=bucket_size,
                  kv_bucket_size=kv_bucket_size, dim=dim,
                  temperature=temperature, sinkhorn_iter=sinkhorn_iter)
    ref_common = dict(bucket_size=bucket_size, kv_bucket_size=kv_bucket_size,
                      dim=dim, temperature=temperature,
                      sinkhorn_iter=sinkhorn_iter)

    # --- non_permutative path: differentiable_topk(R, k=1) ---
    out_topk = attention_sort_net_forward(q, k, non_permutative=True, topk=1,
                                          **common)
    jax.block_until_ready(out_topk)
    ref_topk = _reference_forward(q, k, non_permutative=True, topk=1,
                                  **ref_common)
    buckets = seq_q // bucket_size
    kv_buckets = seq_k // kv_bucket_size
    assert out_topk.shape == (bh, buckets, kv_buckets)
    assert jnp.allclose(out_topk, ref_topk, rtol=2e-3, atol=2e-3)

    # --- sinkhorn path: gumbel_sinkhorn(relu(R)); the same gumbel noise feeds
    #     both the kernel and the reference so the check is deterministic ---
    u = jax.random.uniform(kg, (bh, buckets, kv_buckets), jnp.float32,
                           minval=0.0, maxval=1.0)
    gumbel = -jnp.log(-jnp.log(u + 1e-6) + 1e-6)

    out_sink = attention_sort_net_forward(q, k, non_permutative=False,
                                          gumbel_noise=gumbel, **common)
    jax.block_until_ready(out_sink)
    ref_sink = _reference_forward(q, k, non_permutative=False,
                                  gumbel_noise=gumbel, **ref_common)
    assert out_sink.shape == (bh, buckets, kv_buckets)
    assert jnp.allclose(out_sink, ref_sink, rtol=2e-3, atol=2e-3)

    print("KERNEL_OK")
</pallas_src>

<mosaic_0001>
module attributes {stable_mosaic.version = 11 : i64} {
  func.func @_bucket_sum_kernel(%arg0: i32, %arg1: i32, %arg2: memref<4x8x8x32xf32, #tpu.memory_space<vmem>>, %arg3: memref<4x8x32xf32, #tpu.memory_space<vmem>>) attributes {dimension_semantics = [#tpu.dimension_semantics<parallel>, #tpu.dimension_semantics<parallel>], iteration_bounds = array<i64: 2, 1>, scalar_prefetch = 0 : i64, scratch_operands = 0 : i64, tpu.core_type = #tpu.core_type<tc>, window_params = [{transform_indices = @transform_0, window_bounds = array<i64: 4, 8, 8, 32>}, {transform_indices = @transform_1, window_bounds = array<i64: 4, 8, 32>}]} {
    %c0 = arith.constant 0 : index
    %c0_0 = arith.constant 0 : index
    %c0_1 = arith.constant 0 : index
    %c0_2 = arith.constant 0 : index
    %0 = vector.load %arg2[%c0, %c0_0, %c0_1, %c0_2] : memref<4x8x8x32xf32, #tpu.memory_space<vmem>>, vector<4x8x8x32xf32>
    %cst = arith.constant dense<0.000000e+00> : vector<4x8x32xf32>
    %1 = vector.multi_reduction <add>, %0, %cst [2] : vector<4x8x8x32xf32> to vector<4x8x32xf32>
    %c0_3 = arith.constant 0 : index
    %c0_4 = arith.constant 0 : index
    %c0_5 = arith.constant 0 : index
    %2 = vector.load %arg3[%c0_3, %c0_4, %c0_5] : memref<4x8x32xf32, #tpu.memory_space<vmem>>, vector<4x8x32xf32>
    tpu.vector_store %arg3[%c0_3, %c0_4, %c0_5], %1 {strides = array<i32>} : memref<4x8x32xf32, #tpu.memory_space<vmem>>, vector<4x8x32xf32>,
    return
  }
  func.func @transform_0(%arg0: i32, %arg1: i32) -> (i32, i32, i32, i32) {
    %c0_i32 = arith.constant 0 : i32
    %c0_i32_0 = arith.constant 0 : i32
    %c0_i32_1 = arith.constant 0 : i32
    return %arg0, %arg1, %c0_i32, %c0_i32_0 : i32, i32, i32, i32
  }
  func.func @transform_1(%arg0: i32, %arg1: i32) -> (i32, i32, i32) {
    %c0_i32 = arith.constant 0 : i32
    %c0_i32_0 = arith.constant 0 : i32
    return %arg0, %arg1, %c0_i32 : i32, i32, i32
  }
}

</mosaic_0001>

<llo_original>
// kernel: tpu_custom_call.1
$region0: #{tpu_custom_call.1}
  #allocation0 [shape = 'u32[]', space=smem, size = 0x4, offset = 0x4, fixed_abs, tag = 'smem constant byte address 0x4 - core index']
  #allocation1 [shape = 'u32[144,128]{1,0:T(1,128)}', space=vmem, size = 0x12000, scoped, tag = 'internal scratch']
  %s0 = inlined_call_operand.hbm [shape: f32[8,8,8,32], index: 0, kind: input, shape index: {}]
  %s1 = inlined_call_operand.hbm [shape: f32[8,8,32], index: 1, kind: output, shape index: {}]
  %s2 = sld [smem:[#allocation0]]
  $region41: #{tpu_custom_call.1} parent=0
    _
  %s4 = ssub.s32 1, %s2
  %s5 = scalar_select 0, %s4, %s2
  $region1: #{tpu_custom_call.1} parent=0
    #allocation2 [shape = 'u8[262144]{0}', space=vmem, size = 0x40000, scoped, tag = 'input window, operand 0']
    #allocation3 [shape = 's32[2]{0}', space=sflag, size = 0x8, scoped, tag = 'scoped memory for tpu_custom_call.1']
    #allocation4 [shape = 's32[2]{0}', space=sflag, size = 0x8, scoped, tag = 'scoped memory for tpu_custom_call.1']
    #allocation5 [shape = 'u8[32768]{0}', space=vmem, size = 0x8000, scoped, tag = 'output window, operand 0']
    %6 = vsyncpa [#allocation3], 0
    %s7 = scalar_lea.sflag [#allocation3], 1
    %8 = vsyncpa %s7, 0
    %9 = vsyncpa [#allocation4], 0
    %s10 = scalar_lea.sflag [#allocation4], 1
    %11 = vsyncpa %s10, 0
    loop: start=0, step=1, limit=4
    $region2: #{tpu_custom_call.1} parent=1 // loop_pre_header
      _
    $region3: #{tpu_custom_call.1} parent=1 // loop_header
      %s13 = sphi 0, %s17
      %p14 = scmp.ge.s32.totalorder %s13, 4
      %s20 = sphi 0, %s32
      %s21 = sphi 0, %s28
      %s22 = sphi 0, %s20
      %s23 = sphi 0, %s21
      %s24 = sphi 0, %s22
      %s25 = sphi 0, %s23
      %s37 = sphi 0, %s39
      %s40 = sphi 0, %s37
      %s41 = sphi 0, %s40
      %s57 = sphi 0, %s41
      %s65 = sphi 0, %s67
      %s68 = sphi 0, %s65
      %s69 = sphi 0, %s68
      %s85 = sphi 0, %s69
    $region4: #{tpu_custom_call.1} parent=1 // loop_header_branch
      %16 = sbr.rel (%p14) target = $region8
    $region5: #{tpu_custom_call.1} parent=1 // loop_body
      %s18 = ssub.s32 %s13, 1
      %s19 = ssub.s32 %s13, 2
      %s26 = sadd.s32 1, %s21
      %p27 = scmp.ge.s32.totalorder %s26, 1
      %s28 = scalar_select %p27, 0, %s26
      %s29 = sadd.s32 1, %s20
      %s30 = scalar_select %p27, %s29, %s20
      %p31 = scmp.ge.s32.totalorder %s30, 2
      %s32 = scalar_select %p31, 0, %s30
      %s33 = ssub.s32 %s20, %s32
      %s34 = ssub.s32 %s21, %s28
      %s35 = sor.u32 %s33, %s34
      %p36 = scmp.eq.s32.totalorder %s35, 0
      %s38 = sadd.s32 %s37, 1
      %s39 = scalar_select %p36, %s37, %s38
      %p42 = pneg %p36
      %p43 = scmp.eq.s32.totalorder %s13, 1
      %p44 = por %p42, %p43
      %p45 = scmp.ne.s32.totalorder %s37, %s40
      %p46 = scmp.eq.s32.totalorder %s13, 0
      %p47 = por %p45, %p46
      %p48 = scmp.ne.s32.totalorder %s37, %s40
      %p49 = scmp.eq.s32.totalorder %s18, 1
      %p50 = por %p48, %p49
      %p51 = scmp.ne.s32.totalorder %s40, %s41
      %p52 = scmp.eq.s32.totalorder %s18, 0
      %p53 = por %p51, %p52
      %p54 = scmp.ne.s32.totalorder %s40, %s41
      %p55 = scmp.eq.s32.totalorder %s19, 1
      %p56 = por %p54, %p55
      %p58 = scmp.ne.s32.totalorder %s41, %s57
      %p59 = scmp.eq.s32.totalorder %s19, 0
      %p60 = por %p58, %p59
      %s61 = ssub.s32 %s20, %s32
      %s62 = ssub.s32 %s21, %s28
      %s63 = sor.u32 %s61, %s62
      %p64 = scmp.eq.s32.totalorder %s63, 0
      %s66 = sadd.s32 %s65, 1
      %s67 = scalar_select %p64, %s65, %s66
      %p70 = pneg %p64
      %p71 = scmp.eq.s32.totalorder %s13, 1
      %p72 = por %p70, %p71
      %p73 = scmp.ne.s32.totalorder %s65, %s68
      %p74 = scmp.eq.s32.totalorder %s13, 0
      %p75 = por %p73, %p74
      %p76 = scmp.ne.s32.totalorder %s65, %s68
      %p77 = scmp.eq.s32.totalorder %s18, 1
      %p78 = por %p76, %p77
      %p79 = scmp.ne.s32.totalorder %s68, %s69
      %p80 = scmp.eq.s32.totalorder %s18, 0
      %p81 = por %p79, %p80
      %p82 = scmp.ne.s32.totalorder %s68, %s69
      %p83 = scmp.eq.s32.totalorder %s19, 1
      %p84 = por %p82, %p83
      %p86 = scmp.ne.s32.totalorder %s69, %s85
      %p87 = scmp.eq.s32.totalorder %s19, 0
      %p88 = por %p86, %p87
      %p89 = scmp.le.s32.totalorder 1, %s13
      %p90 = scmp.lt.s32.totalorder %s13, 3
      %p91 = pnand %p89, %p90
      %p92 = pneg %p91
      // Predicated region
      $region9: #{tpu_custom_call.1} parent=5 // pred_check
        _
      $region10: #{tpu_custom_call.1} parent=5 // pred_check_branch
        %94 = sbr.rel (%p91) target = $region12
      $region11: #{tpu_custom_call.1} parent=5 // pred_region
        %s95 = ssub.s32 %s13, 1
      $region12: #{tpu_custom_call.1} parent=5 // pred_fallthru
        _
      %p96 = scmp.lt.s32.totalorder %s13, 2
      // Predicated region
      $region13: #{tpu_custom_call.1} parent=5 // pred_check
        %p97 = pneg %p96
      $region14: #{tpu_custom_call.1} parent=5 // pred_check_branch
        %99 = sbr.rel (%p97) target = $region16
      $region15: #{tpu_custom_call.1} parent=5 // pred_region
        // Predicated region
        $region17: #{tpu_custom_call.1} parent=15 // pred_check
          %p100 = pneg %p47
        $region18: #{tpu_custom_call.1} parent=15 // pred_check_branch
          %102 = sbr.rel (%p100) target = $region20
        $region19: #{tpu_custom_call.1} parent=15 // pred_region
          %s103 = sand.u32 %s37, 1
          %s104 = scalar_lea.sflag [#allocation3], %s103
          %s105 = sand.u32 %s37, 1
          %s106 = smul.addr %s105, 256
          %s107 = scalar_lea.vmem [#allocation2], %s106
          %s108 = smul.u32 4, %s20
          %s109 = smul.u32 8, %s21
          %s111 = ssub.s32 4096, 4096
          %112 = vsyncadd %s104, %s111
          %s113 = smul.addr %s108, 8
          %s114 = sadd.s32 %s109, %s113
          %s115 = smul.addr %s114, 128
          %s116 = scalar_lea.hbm %s0, %s115
          %s117 = sshll.u32 %s107, 4
          %s118 = int_to_ptr.vmem [resolvable:$true] %s117
          %123 = dma.hbm_to_vmem [thread:$0]  %s116, 4096, %s118, %s104, 128, 128, 8
        $region20: #{tpu_custom_call.1} parent=15 // pred_fallthru
          _
      $region16: #{tpu_custom_call.1} parent=5 // pred_fallthru
        _
      %p124 = scmp.le.s32.totalorder 1, %s13
      %p125 = scmp.lt.s32.totalorder %s13, 3
      %p126 = pnand %p124, %p125
      %p127 = pneg %p126
      // Predicated region
      $region21: #{tpu_custom_call.1} parent=5 // pred_check
        _
      $region22: #{tpu_custom_call.1} parent=5 // pred_check_branch
        %129 = sbr.rel (%p126) target = $region24
      $region23: #{tpu_custom_call.1} parent=5 // pred_region
        %s130 = ssub.s32 %s13, 1
        %s131 = sand.u32 %s40, 1
        %s132 = scalar_lea.sflag [#allocation3], %s131
        %s133 = sand.u32 %s40, 1
        %s134 = smul.addr %s133, 256
        %s135 = scalar_lea.vmem [#allocation2], %s134
        // Predicated region
        $region25: #{tpu_custom_call.1} parent=23 // pred_check
          %p136 = pneg %p53
        $region26: #{tpu_custom_call.1} parent=23 // pred_check_branch
          %138 = sbr.rel (%p136) target = $region28
        $region27: #{tpu_custom_call.1} parent=23 // pred_region
          %139 = dma.done %s132, 4096
        $region28: #{tpu_custom_call.1} parent=23 // pred_fallthru
          _
        %s140 = sand.u32 %s40, 1
        %s141 = scalar_lea.sflag [#allocation3], %s140
        %s142 = sand.u32 %s40, 1
        %s143 = smul.addr %s142, 256
        %s144 = scalar_lea.vmem [#allocation2], %s143
        %p145 = pneg %p53
        %p146 = pneg %p50
        %p147 = pneg %p81
        %p148 = pneg %p78
        %s149 = sand.u32 %s68, 1
        %s150 = scalar_lea.sflag [#allocation4], %s149
        %s151 = sand.u32 %s68, 1
        %s152 = smul.addr %s151, 32
        %s153 = scalar_lea.vmem [#allocation5], %s152
        %s154 = smul.u32 4, %s22
        %s155 = smul.u32 8, %s23
        %s156 = smul.u32 4, %s22
        %v157 = vld [vmem:[%s135] sm:$0xff]
        %v158 = vld [vmem:[%s135 + $0x8] sm:$0xff]
        %v159 = vld [vmem:[%s135 + $0x10] sm:$0xff]
        %v160 = vld [vmem:[%s135 + $0x18] sm:$0xff]
        %v161 = vld [vmem:[%s135 + $0x20] sm:$0xff]
        %v162 = vld [vmem:[%s135 + $0x28] sm:$0xff]
        %v163 = vld [vmem:[%s135 + $0x30] sm:$0xff]
        %v164 = vld [vmem:[%s135 + $0x38] sm:$0xff]
        %v165 = vld [vmem:[%s135 + $0x40] sm:$0xff]
        %v166 = vld [vmem:[%s135 + $0x48] sm:$0xff]
        %v167 = vld [vmem:[%s135 + $0x50] sm:$0xff]
        %v168 = vld [vmem:[%s135 + $0x58] sm:$0xff]
        %v169 = vld [vmem:[%s135 + $0x60] sm:$0xff]
        %v170 = vld [vmem:[%s135 + $0x68] sm:$0xff]
        %v171 = vld [vmem:[%s135 + $0x70] sm:$0xff]
        %v172 = vld [vmem:[%s135 + $0x78] sm:$0xff]
        %v173 = vld [vmem:[%s135 + $0x80] sm:$0xff]
        %v174 = vld [vmem:[%s135 + $0x88] sm:$0xff]
        %v175 = vld [vmem:[%s135 + $0x90] sm:$0xff]
        %v176 = vld [vmem:[%s135 + $0x98] sm:$0xff]
        %v177 = vld [vmem:[%s135 + $0xa0] sm:$0xff]
        %v178 = vld [vmem:[%s135 + $0xa8] sm:$0xff]
        %v179 = vld [vmem:[%s135 + $0xb0] sm:$0xff]
        %v180 = vld [vmem:[%s135 + $0xb8] sm:$0xff]
        %v181 = vld [vmem:[%s135 + $0xc0] sm:$0xff]
        %v182 = vld [vmem:[%s135 + $0xc8] sm:$0xff]
        %v183 = vld [vmem:[%s135 + $0xd0] sm:$0xff]
        %v184 = vld [vmem:[%s135 + $0xd8] sm:$0xff]
        %v185 = vld [vmem:[%s135 + $0xe0] sm:$0xff]
        %v186 = vld [vmem:[%s135 + $0xe8] sm:$0xff]
        %v187 = vld [vmem:[%s135 + $0xf0] sm:$0xff]
        %v188 = vld [vmem:[%s135 + $0xf8] sm:$0xff]
        %vm189 = vcmask 261120
        %v190 = vsel %vm189, %v157, 0.0
        %v191 = vrot.slane %v190, 4
        %v192 = vadd.f32 %v190, %v191
        %v193 = vrot.slane %v192, 2
        %v194 = vadd.f32 %v192, %v193
        %v195 = vrot.slane %v194, 1
        %v196 = vadd.f32 %v194, %v195
        %v197 = vsel %vm189, %v158, 0.0
        %v198 = vrot.slane %v197, 4
        %v199 = vadd.f32 %v197, %v198
        %v200 = vrot.slane %v199, 2
        %v201 = vadd.f32 %v199, %v200
        %v202 = vrot.slane %v201, 1
        %v203 = vadd.f32 %v201, %v202
        %v204 = vsel %vm189, %v159, 0.0
        %v205 = vrot.slane %v204, 4
        %v206 = vadd.f32 %v204, %v205
        %v207 = vrot.slane %v206, 2
        %v208 = vadd.f32 %v206, %v207
        %v209 = vrot.slane %v208, 1
        %v210 = vadd.f32 %v208, %v209
        %v211 = vsel %vm189, %v160, 0.0
        %v212 = vrot.slane %v211, 4
        %v213 = vadd.f32 %v211, %v212
        %v214 = vrot.slane %v213, 2
        %v215 = vadd.f32 %v213, %v214
        %v216 = vrot.slane %v215, 1
        %v217 = vadd.f32 %v215, %v216
        %v218 = vsel %vm189, %v161, 0.0
        %v219 = vrot.slane %v218, 4
        %v220 = vadd.f32 %v218, %v219
        %v221 = vrot.slane %v220, 2
        %v222 = vadd.f32 %v220, %v221
        %v223 = vrot.slane %v222, 1
        %v224 = vadd.f32 %v222, %v223
        %v225 = vsel %vm189, %v162, 0.0
        %v226 = vrot.slane %v225, 4
        %v227 = vadd.f32 %v225, %v226
        %v228 = vrot.slane %v227, 2
        %v229 = vadd.f32 %v227, %v228
        %v230 = vrot.slane %v229, 1
        %v231 = vadd.f32 %v229, %v230
        %v232 = vsel %vm189, %v163, 0.0
        %v233 = vrot.slane %v232, 4
        %v234 = vadd.f32 %v232, %v233
        %v235 = vrot.slane %v234, 2
        %v236 = vadd.f32 %v234, %v235
        %v237 = vrot.slane %v236, 1
        %v238 = vadd.f32 %v236, %v237
        %v239 = vsel %vm189, %v164, 0.0
        %v240 = vrot.slane %v239, 4
        %v241 = vadd.f32 %v239, %v240
        %v242 = vrot.slane %v241, 2
        %v243 = vadd.f32 %v241, %v242
        %v244 = vrot.slane %v243, 1
        %v245 = vadd.f32 %v243, %v244
        %v246 = vsel %vm189, %v165, 0.0
        %v247 = vrot.slane %v246, 4
        %v248 = vadd.f32 %v246, %v247
        %v249 = vrot.slane %v248, 2
        %v250 = vadd.f32 %v248, %v249
        %v251 = vrot.slane %v250, 1
        %v252 = vadd.f32 %v250, %v251
        %v253 = vsel %vm189, %v166, 0.0
        %v254 = vrot.slane %v253, 4
        %v255 = vadd.f32 %v253, %v254
        %v256 = vrot.slane %v255, 2
        %v257 = vadd.f32 %v255, %v256
        %v258 = vrot.slane %v257, 1
        %v259 = vadd.f32 %v257, %v258
        %v260 = vsel %vm189, %v167, 0.0
        %v261 = vrot.slane %v260, 4
        %v262 = vadd.f32 %v260, %v261
        %v263 = vrot.slane %v262, 2
        %v264 = vadd.f32 %v262, %v263
        %v265 = vrot.slane %v264, 1
        %v266 = vadd.f32 %v264, %v265
        %v267 = vsel %vm189, %v168, 0.0
        %v268 = vrot.slane %v267, 4
        %v269 = vadd.f32 %v267, %v268
        %v270 = vrot.slane %v269, 2
        %v271 = vadd.f32 %v269, %v270
        %v272 = vrot.slane %v271, 1
        %v273 = vadd.f32 %v271, %v272
        %v274 = vsel %vm189, %v169, 0.0
        %v275 = vrot.slane %v274, 4
        %v276 = vadd.f32 %v274, %v275
        %v277 = vrot.slane %v276, 2
        %v278 = vadd.f32 %v276, %v277
        %v279 = vrot.slane %v278, 1
        %v280 = vadd.f32 %v278, %v279
        %v281 = vsel %vm189, %v170, 0.0
        %v282 = vrot.slane %v281, 4
        %v283 = vadd.f32 %v281, %v282
        %v284 = vrot.slane %v283, 2
        %v285 = vadd.f32 %v283, %v284
        %v286 = vrot.slane %v285, 1
        %v287 = vadd.f32 %v285, %v286
        %v288 = vsel %vm189, %v171, 0.0
        %v289 = vrot.slane %v288, 4
        %v290 = vadd.f32 %v288, %v289
        %v291 = vrot.slane %v290, 2
        %v292 = vadd.f32 %v290, %v291
        %v293 = vrot.slane %v292, 1
        %v294 = vadd.f32 %v292, %v293
        %v295 = vsel %vm189, %v172, 0.0
        %v296 = vrot.slane %v295, 4
        %v297 = vadd.f32 %v295, %v296
        %v298 = vrot.slane %v297, 2
        %v299 = vadd.f32 %v297, %v298
        %v300 = vrot.slane %v299, 1
        %v301 = vadd.f32 %v299, %v300
        %v302 = vsel %vm189, %v173, 0.0
        %v303 = vrot.slane %v302, 4
        %v304 = vadd.f32 %v302, %v303
        %v305 = vrot.slane %v304, 2
        %v306 = vadd.f32 %v304, %v305
        %v307 = vrot.slane %v306, 1
        %v308 = vadd.f32 %v306, %v307
        %v309 = vsel %vm189, %v174, 0.0
        %v310 = vrot.slane %v309, 4
        %v311 = vadd.f32 %v309, %v310
        %v312 = vrot.slane %v311, 2
        %v313 = vadd.f32 %v311, %v312
        %v314 = vrot.slane %v313, 1
        %v315 = vadd.f32 %v313, %v314
        %v316 = vsel %vm189, %v175, 0.0
        %v317 = vrot.slane %v316, 4
        %v318 = vadd.f32 %v316, %v317
        %v319 = vrot.slane %v318, 2
        %v320 = vadd.f32 %v318, %v319
        %v321 = vrot.slane %v320, 1
        %v322 = vadd.f32 %v320, %v321
        %v323 = vsel %vm189, %v176, 0.0
        %v324 = vrot.slane %v323, 4
        %v325 = vadd.f32 %v323, %v324
        %v326 = vrot.slane %v325, 2
        %v327 = vadd.f32 %v325, %v326
        %v328 = vrot.slane %v327, 1
        %v329 = vadd.f32 %v327, %v328
        %v330 = vsel %vm189, %v177, 0.0
        %v331 = vrot.slane %v330, 4
        %v332 = vadd.f32 %v330, %v331
        %v333 = vrot.slane %v332, 2
        %v334 = vadd.f32 %v332, %v333
        %v335 = vrot.slane %v334, 1
        %v336 = vadd.f32 %v334, %v335
        %v337 = vsel %vm189, %v178, 0.0
        %v338 = vrot.slane %v337, 4
        %v339 = vadd.f32 %v337, %v338
        %v340 = vrot.slane %v339, 2
        %v341 = vadd.f32 %v339, %v340
        %v342 = vrot.slane %v341, 1
        %v343 = vadd.f32 %v341, %v342
        %v344 = vsel %vm189, %v179, 0.0
        %v345 = vrot.slane %v344, 4
        %v346 = vadd.f32 %v344, %v345
        %v347 = vrot.slane %v346, 2
        %v348 = vadd.f32 %v346, %v347
        %v349 = vrot.slane %v348, 1
        %v350 = vadd.f32 %v348, %v349
        %v351 = vsel %vm189, %v180, 0.0
        %v352 = vrot.slane %v351, 4
        %v353 = vadd.f32 %v351, %v352
        %v354 = vrot.slane %v353, 2
        %v355 = vadd.f32 %v353, %v354
        %v356 = vrot.slane %v355, 1
        %v357 = vadd.f32 %v355, %v356
        %v358 = vsel %vm189, %v181, 0.0
        %v359 = vrot.slane %v358, 4
        %v360 = vadd.f32 %v358, %v359
        %v361 = vrot.slane %v360, 2
        %v362 = vadd.f32 %v360, %v361
        %v363 = vrot.slane %v362, 1
        %v364 = vadd.f32 %v362, %v363
        %v365 = vsel %vm189, %v182, 0.0
        %v366 = vrot.slane %v365, 4
        %v367 = vadd.f32 %v365, %v366
        %v368 = vrot.slane %v367, 2
        %v369 = vadd.f32 %v367, %v368
        %v370 = vrot.slane %v369, 1
        %v371 = vadd.f32 %v369, %v370
        %v372 = vsel %vm189, %v183, 0.0
        %v373 = vrot.slane %v372, 4
        %v374 = vadd.f32 %v372, %v373
        %v375 = vrot.slane %v374, 2
        %v376 = vadd.f32 %v374, %v375
        %v377 = vrot.slane %v376, 1
        %v378 = vadd.f32 %v376, %v377
        %v379 = vsel %vm189, %v184, 0.0
        %v380 = vrot.slane %v379, 4
        %v381 = vadd.f32 %v379, %v380
        %v382 = vrot.slane %v381, 2
        %v383 = vadd.f32 %v381, %v382
        %v384 = vrot.slane %v383, 1
        %v385 = vadd.f32 %v383, %v384
        %v386 = vsel %vm189, %v185, 0.0
        %v387 = vrot.slane %v386, 4
        %v388 = vadd.f32 %v386, %v387
        %v389 = vrot.slane %v388, 2
        %v390 = vadd.f32 %v388, %v389
        %v391 = vrot.slane %v390, 1
        %v392 = vadd.f32 %v390, %v391
        %v393 = vsel %vm189, %v186, 0.0
        %v394 = vrot.slane %v393, 4
        %v395 = vadd.f32 %v393, %v394
        %v396 = vrot.slane %v395, 2
        %v397 = vadd.f32 %v395, %v396
        %v398 = vrot.slane %v397, 1
        %v399 = vadd.f32 %v397, %v398
        %v400 = vsel %vm189, %v187, 0.0
        %v401 = vrot.slane %v400, 4
        %v402 = vadd.f32 %v400, %v401
        %v403 = vrot.slane %v402, 2
        %v404 = vadd.f32 %v402, %v403
        %v405 = vrot.slane %v404, 1
        %v406 = vadd.f32 %v404, %v405
        %v407 = vsel %vm189, %v188, 0.0
        %v408 = vrot.slane %v407, 4
        %v409 = vadd.f32 %v407, %v408
        %v410 = vrot.slane %v409, 2
        %v411 = vadd.f32 %v409, %v410
        %v412 = vrot.slane %v411, 1
        %v413 = vadd.f32 %v411, %v412
        %vm446 = vcmask 1041409
        %v447 = vsel %vm446, %v203, %v196
        %vm448 = vcmask 1042434
        %v449 = vsel %vm448, %v210, %v447
        %vm450 = vcmask 1043459
        %v451 = vsel %vm450, %v217, %v449
        %vm452 = vcmask 1044484
        %v453 = vsel %vm452, %v224, %v451
        %vm454 = vcmask 1045509
        %v455 = vsel %vm454, %v231, %v453
        %vm456 = vcmask 1046534
        %v457 = vsel %vm456, %v238, %v455
        %vm458 = vcmask 1047559
        %v459 = vsel %vm458, %v245, %v457
        %v460 = vsel %vm446, %v259, %v252
        %v461 = vsel %vm448, %v266, %v460
        %v462 = vsel %vm450, %v273, %v461
        %v463 = vsel %vm452, %v280, %v462
        %v464 = vsel %vm454, %v287, %v463
        %v465 = vsel %vm456, %v294, %v464
        %v466 = vsel %vm458, %v301, %v465
        %v467 = vsel %vm446, %v315, %v308
        %v468 = vsel %vm448, %v322, %v467
        %v469 = vsel %vm450, %v329, %v468
        %v470 = vsel %vm452, %v336, %v469
        %v471 = vsel %vm454, %v343, %v470
        %v472 = vsel %vm456, %v350, %v471
        %v473 = vsel %vm458, %v357, %v472
        %v474 = vsel %vm446, %v371, %v364
        %v475 = vsel %vm448, %v378, %v474
        %v476 = vsel %vm450, %v385, %v475
        %v477 = vsel %vm452, %v392, %v476
        %v478 = vsel %vm454, %v399, %v477
        %v479 = vsel %vm456, %v406, %v478
        %v480 = vsel %vm458, %v413, %v479
        %485 = vst.msk [vmem:[%s153] sm:$0xff] %vm189, %v459
        %486 = vst.msk [vmem:[%s153 + $0x8] sm:$0xff] %vm189, %v466
        %487 = vst.msk [vmem:[%s153 + $0x10] sm:$0xff] %vm189, %v473
        %488 = vst.msk [vmem:[%s153 + $0x18] sm:$0xff] %vm189, %v480
        %s489 = sand.u32 %s68, 1
        %s490 = scalar_lea.sflag [#allocation4], %s489
        %s491 = sand.u32 %s68, 1
        %s492 = smul.addr %s491, 32
        %s493 = scalar_lea.vmem [#allocation5], %s492
        // Predicated region
        $region29: #{tpu_custom_call.1} parent=23 // pred_check
          %p494 = pneg %p78
        $region30: #{tpu_custom_call.1} parent=23 // pred_check_branch
          %496 = sbr.rel (%p494) target = $region32
        $region31: #{tpu_custom_call.1} parent=23 // pred_region
          %s497 = smul.u32 4, %s22
          %s499 = ssub.s32 512, 512
          %500 = vsyncadd %s490, %s499
          %s501 = sadd.s32 %s23, %s497
          %s502 = smul.addr %s501, 128
          %s503 = scalar_lea.hbm %s1, %s502
          %s504 = sshll.u32 %s493, 4
          %s505 = int_to_ptr.vmem [resolvable:$true] %s504
          %510 = dma.vmem_to_hbm [thread:$0]  %s505, 512, %s503, %s490, 128, 128, 8
        $region32: #{tpu_custom_call.1} parent=23 // pred_fallthru
          _
      $region24: #{tpu_custom_call.1} parent=5 // pred_fallthru
        _
      %p511 = scmp.le.s32.totalorder 2, %s13
      // Predicated region
      $region33: #{tpu_custom_call.1} parent=5 // pred_check
        %p512 = pneg %p511
      $region34: #{tpu_custom_call.1} parent=5 // pred_check_branch
        %514 = sbr.rel (%p512) target = $region36
      $region35: #{tpu_custom_call.1} parent=5 // pred_region
        %s515 = ssub.s32 %s13, 2
        // Predicated region
        $region37: #{tpu_custom_call.1} parent=35 // pred_check
          %p516 = pneg %p84
        $region38: #{tpu_custom_call.1} parent=35 // pred_check_branch
          %518 = sbr.rel (%p516) target = $region40
        $region39: #{tpu_custom_call.1} parent=35 // pred_region
          %s519 = sand.u32 %s69, 1
          %s520 = scalar_lea.sflag [#allocation4], %s519
          %s521 = sand.u32 %s69, 1
          %s522 = smul.addr %s521, 32
          %s523 = scalar_lea.vmem [#allocation5], %s522
          %524 = dma.done %s520, 512
        $region40: #{tpu_custom_call.1} parent=35 // pred_fallthru
          _
      $region36: #{tpu_custom_call.1} parent=5 // pred_fallthru
        _
    $region6: #{tpu_custom_call.1} parent=1 // loop_footer
      %s17 = sadd.s32 1, %s13
    $region7: #{tpu_custom_call.1} parent=1 // loop_footer_branch
      %12 = sbr.rel target = $region3
    $region8: #{tpu_custom_call.1} parent=1 // loop_exit
      _
    %525 = vsyncpa [#allocation3], 1
    %s526 = scalar_lea.sflag [#allocation3], 1
    %527 = vsyncpa %s526, 1
    %528 = vsyncpa [#allocation4], 1
    %s529 = scalar_lea.sflag [#allocation4], 1
    %530 = vsyncpa %s529, 1

</llo_original>
